<compile_context>
chip_gen: v7x
topology: tpu7x:2x2x1
jax: 0.10.0
libtpu: 0.0.40
codegen_flags: <defaults>
</compile_context>

<pallas_src>
import jax
import jax.numpy as jnp
from jax import lax
from jax.experimental import pallas as pl
from jax.experimental.pallas import tpu as pltpu


def _attn_kernel(q_ref, k_ref, adj_ref, mask_ref, out_ref):
    """One (batch, query-row-tile, head) step.

    Refs (leading singleton dims squeezed via None in block_shape):
      q_ref   : (TQ, d_k)  pre-projected Q rows for this head / row tile
      k_ref   : (Lp, d_k)  pre-projected K rows for this head
      adj_ref : (TQ, Lp)   adjacency rows (0/1, zero in the padded region)
      mask_ref: (1, Lp)    key mask: 1 = valid, 0 = real pad token, -1 = Lp padding
      out_ref : (TQ, Lp)   attention weights
    """
    q = q_ref[...]
    k = k_ref[...]
    adj = adj_ref[...]
    mval = mask_ref[...]                                   # (1, Lp)

    mbool = mval > 0.0                                     # valid keys
    # The reference adds +1e-10 on the real L key positions only (valid + real
    # pad); artificial Lp padding must contribute nothing to the denominator.
    eps = jnp.where(mval >= 0.0, 1e-10, 0.0)               # (1, Lp)

    # scores = Q @ K^T (contract d_k) on the MXU.
    s = lax.dot_general(q, k, (((1,), (1,)), ((), ())),
                        preferred_element_type=jnp.float32)       # (TQ, Lp)

    # Masked two-pass mean / variance over the key axis (matches reference).
    nvalid = jnp.sum(jnp.where(mbool, 1.0, 0.0), axis=-1, keepdims=True)   # (1, 1)
    dd = nvalid + 0.01
    mean = jnp.sum(jnp.where(mbool, s, 0.0), axis=-1, keepdims=True) / dd  # (TQ, 1)
    dev = s - mean
    var = jnp.sum(jnp.where(mbool, dev * dev, 0.0), axis=-1, keepdims=True) / dd
    zs = dev * lax.rsqrt(var)                                              # EUP rsqrt

    # Degenerate fallback: var == 0 is exactly the condition under which the
    # reference z-score produces NaN (0/0), so no isnan/any pass is needed.
    # TODO(synk): PyTorch applies the fallback globally over (B,h,L,L);
    # here it is applied per query row.
    res = jnp.where(var <= 0.0, s, zs)

    # Threshold + masked, adjacency-weighted softmax (collapsed select chain).
    keep = mbool & (res >= 0.0)                            # valid & not thresholded
    sc = jnp.where(keep, res, -1e9)
    sc = sc - jnp.max(sc, axis=-1, keepdims=True)
    e = jnp.exp(sc) * adj + eps
    inv_denom = 1.0 / jnp.sum(e, axis=-1, keepdims=True)   # exact per-row reciprocal
    w = e * inv_denom

    out_ref[...] = jnp.where(keep & (adj != 0.0), w, 0.0)


def multi_head_attention(query, adj, rel, mask, wq, bq, wk, bk, *, h, tq=None):
    B, L, D = query.shape
    d_k = D // h

    # --- hoisted projections: one MXU-shaped matmul each (K = 2D / D, N = D) ---
    Q = jnp.concatenate([query, rel], axis=-1) @ wq + bq           # (B, L, D)
    K = query @ wk + bk                                            # (B, L, D)
    Qh = Q.reshape(B, L, h, d_k).transpose(0, 2, 1, 3)             # (B, h, L, d_k)
    Kh = K.reshape(B, L, h, d_k).transpose(0, 2, 1, 3)             # (B, h, L, d_k)

    # --- pad sequence axis to a multiple of 128 -> lane-dense output stores ---
    Lp = ((L + 127) // 128) * 128
    pad = Lp - L
    Qh = jnp.pad(Qh, ((0, 0), (0, 0), (0, pad), (0, 0)))
    Kh = jnp.pad(Kh, ((0, 0), (0, 0), (0, pad), (0, 0)))
    adj_p = jnp.pad(adj.astype(jnp.float32), ((0, 0), (0, pad), (0, pad)))
    # key-mask encoding: 1 = valid, 0 = real pad token, -1 = artificial padding
    mask_p = jnp.pad(mask.astype(jnp.float32), ((0, 0), (0, 0), (0, pad)),
                     constant_values=-1.0)

    # Query-row tile: caps per-step VMEM at ~ 2 bufs x 2 arrays x TQ x Lp x 4 B.
    if tq is None:
        tq = Lp if Lp <= 512 else next(t for t in (512, 384, 256, 128) if Lp % t == 0)
    n_rt = Lp // tq

    grid_spec = pltpu.PrefetchScalarGridSpec(
        num_scalar_prefetch=0,
        grid=(B, n_rt, h),   # head innermost -> (TQ, Lp) adj block reused across heads
        in_specs=[
            pl.BlockSpec((None, None, tq, d_k), lambda b, r, hh: (b, hh, r, 0)),  # Q_h
            pl.BlockSpec((None, None, Lp, d_k), lambda b, r, hh: (b, hh, 0, 0)),  # K_h
            pl.BlockSpec((None, tq, Lp), lambda b, r, hh: (b, r, 0)),             # adj
            pl.BlockSpec((None, 1, Lp), lambda b, r, hh: (b, 0, 0)),              # mask
        ],
        out_specs=pl.BlockSpec((None, None, tq, Lp), lambda b, r, hh: (b, hh, r, 0)),
    )

    cost = pl.CostEstimate(
        flops=2 * B * h * Lp * Lp * d_k,
        transcendentals=B * h * Lp * Lp,
        bytes_accessed=4 * (B * Lp * Lp + 2 * B * h * Lp * d_k + B * Lp
                            + B * h * Lp * Lp),
    )

    out_p = pl.pallas_call(
        _attn_kernel,
        out_shape=jax.ShapeDtypeStruct((B, h, Lp, Lp), jnp.float32),
        grid_spec=grid_spec,
        compiler_params=pltpu.CompilerParams(
            dimension_semantics=("parallel", "parallel", "parallel"),
            vmem_limit_bytes=48 * 1024 * 1024),
        cost_estimate=cost,
    )(Qh, Kh, adj_p, mask_p)

    return out_p[:, :, :L, :L]


def reference(query, adj, rel, mask, wq, bq, wk, bk, *, h):
    """Pure-JAX replica of the PyTorch forward (eval mode) for validation."""
    B, L, D = query.shape
    d_k = D // h
    m4 = mask[:, None, :, :]                                # (B,1,1,L)
    Q = jnp.concatenate([query, rel], -1) @ wq + bq
    K = query @ wk + bk
    Qh = Q.reshape(B, L, h, d_k).transpose(0, 2, 1, 3)
    Kh = K.reshape(B, L, h, d_k).transpose(0, 2, 1, 3)
    scores = jnp.einsum('bhqd,bhkd->bhqk', Qh, Kh)
    mb = m4 != 0
    dd = jnp.sum(mask, axis=-1)[:, :, None, None] + 0.01
    mean = jnp.sum(jnp.where(mb, scores, 0.0), -1, keepdims=True) / dd
    var = jnp.sum(jnp.where(mb, (scores - mean) ** 2, 0.0), -1, keepdims=True) / dd
    res = (scores - mean) / jnp.sqrt(var)
    res = jnp.where(jnp.any(jnp.isnan(res)), scores, res)
    res = jnp.where(mb, res, 0.0)
    thresh = res < 0
    sc = jnp.where(thresh, -1e9, res)
    sc = jnp.where(mb, sc, -1e9)
    sc = sc - jnp.max(sc, -1, keepdims=True)
    e = jnp.exp(sc) * adj[:, None]
    e = jnp.where(mb, e, 0.0) + 1e-10
    w = e / jnp.sum(e, -1, keepdims=True)
    w = jnp.where(mb, w, 0.0)
    kill = (~mb) | thresh | (adj[:, None] == 0)
    return jnp.where(kill, 0.0, w)


if __name__ == "__main__":
    B, L, d_model, h = 2, 8, 32, 4
    key = jax.random.PRNGKey(0)
    k1, k2, k3, k4, k5, k6, k7 = jax.random.split(key, 7)

    query = jax.random.normal(k1, (B, L, d_model), jnp.float32)
    rel = jax.random.normal(k2, (B, L, d_model), jnp.float32)
    adj = (jax.random.uniform(k3, (B, L, L)) > 0.4).astype(jnp.float32)
    adj = jnp.maximum(adj, jnp.eye(L, dtype=jnp.float32)[None])

    lengths = jnp.array([L, L - 2])
    mask = (jnp.arange(L)[None, :] < lengths[:, None]).astype(jnp.float32)
    mask = mask[:, None, :]                                 # (B, 1, L)

    wq = 0.1 * jax.random.normal(k4, (2 * d_model, d_model), jnp.float32)
    bq = 0.05 * jax.random.normal(k5, (1, d_model), jnp.float32)
    wk = 0.1 * jax.random.normal(k6, (d_model, d_model), jnp.float32)
    bk = 0.05 * jax.random.normal(k7, (1, d_model), jnp.float32)

    out = multi_head_attention(query, adj, rel, mask, wq, bq, wk, bk, h=h)
    out = jax.block_until_ready(out)

    ref = reference(query, adj, rel, mask, wq, bq, wk, bk, h=h)
    assert out.shape == (B, h, L, L)
    err = float(jnp.max(jnp.abs(out - ref)))
    assert err < 2e-3, f"mismatch vs reference: max |err| = {err}"
    print("KERNEL_OK")
</pallas_src>

<mosaic_0001>
module attributes {stable_mosaic.version = 11 : i64} {
  func.func @_attn_kernel(%arg0: i32, %arg1: i32, %arg2: i32, %arg3: memref<1x1x128x8xf32, #tpu.memory_space<vmem>>, %arg4: memref<1x1x128x8xf32, #tpu.memory_space<vmem>>, %arg5: memref<1x128x128xf32, #tpu.memory_space<vmem>>, %arg6: memref<1x1x128xf32, #tpu.memory_space<vmem>>, %arg7: memref<1x1x128x128xf32, #tpu.memory_space<vmem>>) attributes {dimension_semantics = [#tpu.dimension_semantics<parallel>, #tpu.dimension_semantics<parallel>, #tpu.dimension_semantics<parallel>], iteration_bounds = array<i64: 2, 1, 4>, scalar_prefetch = 0 : i64, scratch_operands = 0 : i64, tpu.core_type = #tpu.core_type<tc>, window_params = [{transform_indices = @transform_0, window_bounds = array<i64: 1, 1, 128, 8>}, {transform_indices = @transform_1, window_bounds = array<i64: 1, 1, 128, 8>}, {transform_indices = @transform_2, window_bounds = array<i64: 1, 128, 128>}, {transform_indices = @transform_3, window_bounds = array<i64: 1, 1, 128>}, {transform_indices = @transform_4, window_bounds = array<i64: 1, 1, 128, 128>}]} {
    %c0 = arith.constant 0 : index
    %c0_0 = arith.constant 0 : index
    %c0_1 = arith.constant 0 : index
    %c0_2 = arith.constant 0 : index
    %0 = vector.load %arg3[%c0, %c0_0, %c0_1, %c0_2] : memref<1x1x128x8xf32, #tpu.memory_space<vmem>>, vector<1x1x128x8xf32>
    %1 = vector.shape_cast %0 : vector<1x1x128x8xf32> to vector<128x8xf32>
    %c0_3 = arith.constant 0 : index
    %c0_4 = arith.constant 0 : index
    %c0_5 = arith.constant 0 : index
    %c0_6 = arith.constant 0 : index
    %2 = vector.load %arg4[%c0_3, %c0_4, %c0_5, %c0_6] : memref<1x1x128x8xf32, #tpu.memory_space<vmem>>, vector<1x1x128x8xf32>
    %3 = vector.shape_cast %2 : vector<1x1x128x8xf32> to vector<128x8xf32>
    %c0_7 = arith.constant 0 : index
    %c0_8 = arith.constant 0 : index
    %c0_9 = arith.constant 0 : index
    %4 = vector.load %arg5[%c0_7, %c0_8, %c0_9] : memref<1x128x128xf32, #tpu.memory_space<vmem>>, vector<1x128x128xf32>
    %5 = vector.shape_cast %4 : vector<1x128x128xf32> to vector<128x128xf32>
    %c0_10 = arith.constant 0 : index
    %c0_11 = arith.constant 0 : index
    %c0_12 = arith.constant 0 : index
    %6 = vector.load %arg6[%c0_10, %c0_11, %c0_12] : memref<1x1x128xf32, #tpu.memory_space<vmem>>, vector<1x1x128xf32>
    %7 = vector.shape_cast %6 : vector<1x1x128xf32> to vector<1x128xf32>
    %cst = arith.constant 0.000000e+00 : f32
    %8 = vector.broadcast %cst : f32 to vector<1x128xf32>
    %9 = arith.cmpf ogt, %7, %8 : vector<1x128xf32>
    %cst_13 = arith.constant 0.000000e+00 : f32
    %10 = vector.broadcast %cst_13 : f32 to vector<1x128xf32>
    %11 = arith.cmpf oge, %7, %10 : vector<1x128xf32>
    %cst_14 = arith.constant 1.000000e-10 : f32
    %cst_15 = arith.constant 0.000000e+00 : f32
    %12 = vector.broadcast %cst_14 : f32 to vector<1x128xf32>
    %13 = vector.broadcast %cst_15 : f32 to vector<1x128xf32>
    %14 = arith.select %11, %12, %13 : vector<1x128xi1>, vector<1x128xf32>
    %cst_16 = arith.constant dense<0.000000e+00> : vector<128x128xf32>
    %15 = tpu.matmul %1, %3, %cst_16 {dimension_numbers = #tpu.dot_dimension_numbers<[1], [1], [0], [0], [0, 0, 1, 0], [], []>} : vector<128x8xf32>, vector<128x8xf32>, vector<128x128xf32> -> vector<128x128xf32>
    %cst_17 = arith.constant 1.000000e+00 : f32
    %cst_18 = arith.constant 0.000000e+00 : f32
    %16 = vector.broadcast %cst_17 : f32 to vector<1x128xf32>
    %17 = vector.broadcast %cst_18 : f32 to vector<1x128xf32>
    %18 = arith.select %9, %16, %17 : vector<1x128xi1>, vector<1x128xf32>
    %cst_19 = arith.constant dense<0.000000e+00> : vector<1xf32>
    %19 = vector.multi_reduction <add>, %18, %cst_19 [1] : vector<1x128xf32> to vector<1xf32>
    %20 = vector.shape_cast %19 : vector<1xf32> to vector<1x1xf32>
    %cst_20 = arith.constant 0.00999999977 : f32
    %21 = vector.broadcast %cst_20 : f32 to vector<1x1xf32>
    %22 = arith.addf %20, %21 : vector<1x1xf32>
    %cst_21 = arith.constant 0.000000e+00 : f32
    %23 = vector.shape_cast %9 : vector<1x128xi1> to vector<1x128xi1>
    %24 = vector.broadcast %23 : vector<1x128xi1> to vector<128x128xi1>
    %25 = vector.broadcast %cst_21 : f32 to vector<128x128xf32>
    %26 = arith.select %24, %15, %25 : vector<128x128xi1>, vector<128x128xf32>
    %cst_22 = arith.constant dense<0.000000e+00> : vector<128xf32>
    %27 = vector.multi_reduction <add>, %26, %cst_22 [1] : vector<128x128xf32> to vector<128xf32>
    %28 = vector.shape_cast %27 : vector<128xf32> to vector<128x1xf32>
    %29 = vector.broadcast %22 : vector<1x1xf32> to vector<128x1xf32>
    %30 = arith.divf %28, %29 : vector<128x1xf32>
    %31 = vector.broadcast %30 : vector<128x1xf32> to vector<128x128xf32>
    %32 = arith.subf %15, %31 : vector<128x128xf32>
    %33 = arith.mulf %32, %32 : vector<128x128xf32>
    %cst_23 = arith.constant 0.000000e+00 : f32
    %34 = vector.shape_cast %9 : vector<1x128xi1> to vector<1x128xi1>
    %35 = vector.broadcast %34 : vector<1x128xi1> to vector<128x128xi1>
    %36 = vector.broadcast %cst_23 : f32 to vector<128x128xf32>
    %37 = arith.select %35, %33, %36 : vector<128x128xi1>, vector<128x128xf32>
    %cst_24 = arith.constant dense<0.000000e+00> : vector<128xf32>
    %38 = vector.multi_reduction <add>, %37, %cst_24 [1] : vector<128x128xf32> to vector<128xf32>
    %39 = vector.shape_cast %38 : vector<128xf32> to vector<128x1xf32>
    %40 = vector.broadcast %22 : vector<1x1xf32> to vector<128x1xf32>
    %41 = arith.divf %39, %40 : vector<128x1xf32>
    %42 = math.rsqrt %41 : vector<128x1xf32>
    %43 = vector.broadcast %42 : vector<128x1xf32> to vector<128x128xf32>
    %44 = arith.mulf %32, %43 : vector<128x128xf32>
    %cst_25 = arith.constant 0.000000e+00 : f32
    %45 = vector.broadcast %cst_25 : f32 to vector<128x1xf32>
    %46 = arith.cmpf ole, %41, %45 : vector<128x1xf32>
    %47 = vector.shape_cast %46 : vector<128x1xi1> to vector<128x1xi1>
    %48 = vector.broadcast %47 : vector<128x1xi1> to vector<128x128xi1>
    %49 = arith.select %48, %15, %44 : vector<128x128xi1>, vector<128x128xf32>
    %cst_26 = arith.constant 0.000000e+00 : f32
    %50 = vector.broadcast %cst_26 : f32 to vector<128x128xf32>
    %51 = arith.cmpf oge, %49, %50 : vector<128x128xf32>
    %52 = vector.broadcast %9 : vector<1x128xi1> to vector<128x128xi1>
    %53 = arith.andi %52, %51 : vector<128x128xi1>
    %cst_27 = arith.constant -1.000000e+09 : f32
    %54 = vector.broadcast %cst_27 : f32 to vector<128x128xf32>
    %55 = arith.select %53, %49, %54 : vector<128x128xi1>, vector<128x128xf32>
    %cst_28 = arith.constant dense<0xFF800000> : vector<128xf32>
    %56 = vector.multi_reduction <maximumf>, %55, %cst_28 [1] : vector<128x128xf32> to vector<128xf32>
    %57 = vector.shape_cast %56 : vector<128xf32> to vector<128x1xf32>
    %58 = vector.broadcast %57 : vector<128x1xf32> to vector<128x128xf32>
    %59 = arith.subf %55, %58 : vector<128x128xf32>
    %60 = math.exp %59 : vector<128x128xf32>
    %61 = arith.mulf %60, %5 : vector<128x128xf32>
    %62 = vector.broadcast %14 : vector<1x128xf32> to vector<128x128xf32>
    %63 = arith.addf %61, %62 : vector<128x128xf32>
    %cst_29 = arith.constant dense<0.000000e+00> : vector<128xf32>
    %64 = vector.multi_reduction <add>, %63, %cst_29 [1] : vector<128x128xf32> to vector<128xf32>
    %65 = vector.shape_cast %64 : vector<128xf32> to vector<128x1xf32>
    %cst_30 = arith.constant 1.000000e+00 : f32
    %66 = vector.broadcast %cst_30 : f32 to vector<128x1xf32>
    %67 = arith.divf %66, %65 : vector<128x1xf32>
    %68 = vector.broadcast %67 : vector<128x1xf32> to vector<128x128xf32>
    %69 = arith.mulf %63, %68 : vector<128x128xf32>
    %cst_31 = arith.constant 0.000000e+00 : f32
    %70 = vector.broadcast %cst_31 : f32 to vector<128x128xf32>
    %71 = arith.cmpf one, %5, %70 : vector<128x128xf32>
    %72 = arith.andi %53, %71 : vector<128x128xi1>
    %cst_32 = arith.constant 0.000000e+00 : f32
    %73 = vector.broadcast %cst_32 : f32 to vector<128x128xf32>
    %74 = arith.select %72, %69, %73 : vector<128x128xi1>, vector<128x128xf32>
    %c0_33 = arith.constant 0 : index
    %c0_34 = arith.constant 0 : index
    %c0_35 = arith.constant 0 : index
    %c0_36 = arith.constant 0 : index
    %75 = vector.load %arg7[%c0_33, %c0_34, %c0_35, %c0_36] : memref<1x1x128x128xf32, #tpu.memory_space<vmem>>, vector<1x1x128x128xf32>
    %76 = vector.shape_cast %75 : vector<1x1x128x128xf32> to vector<128x128xf32>
    %77 = vector.shape_cast %74 : vector<128x128xf32> to vector<1x1x128x128xf32>
    tpu.vector_store %arg7[%c0_33, %c0_34, %c0_35, %c0_36], %77 {strides = array<i32>} : memref<1x1x128x128xf32, #tpu.memory_space<vmem>>, vector<1x1x128x128xf32>,
    return
  }
  func.func @transform_0(%arg0: i32, %arg1: i32, %arg2: i32) -> (i32, i32, i32, i32) {
    %c0_i32 = arith.constant 0 : i32
    %c0_i32_0 = arith.constant 0 : i32
    return %arg0, %arg2, %arg1, %c0_i32 : i32, i32, i32, i32
  }
  func.func @transform_1(%arg0: i32, %arg1: i32, %arg2: i32) -> (i32, i32, i32, i32) {
    %c0_i32 = arith.constant 0 : i32
    %c0_i32_0 = arith.constant 0 : i32
    %c0_i32_1 = arith.constant 0 : i32
    return %arg0, %arg2, %c0_i32, %c0_i32_0 : i32, i32, i32, i32
  }
  func.func @transform_2(%arg0: i32, %arg1: i32, %arg2: i32) -> (i32, i32, i32) {
    %c0_i32 = arith.constant 0 : i32
    %c0_i32_0 = arith.constant 0 : i32
    return %arg0, %arg1, %c0_i32 : i32, i32, i32
  }
  func.func @transform_3(%arg0: i32, %arg1: i32, %arg2: i32) -> (i32, i32, i32) {
    %c0_i32 = arith.constant 0 : i32
    %c0_i32_0 = arith.constant 0 : i32
    %c0_i32_1 = arith.constant 0 : i32
    return %arg0, %c0_i32, %c0_i32_0 : i32, i32, i32
  }
  func.func @transform_4(%arg0: i32, %arg1: i32, %arg2: i32) -> (i32, i32, i32, i32) {
    %c0_i32 = arith.constant 0 : i32
    %c0_i32_0 = arith.constant 0 : i32
    return %arg0, %arg2, %arg1, %c0_i32 : i32, i32, i32, i32
  }
}

</mosaic_0001>

<llo_original>
// kernel: tpu_custom_call.1
$region0: #{tpu_custom_call.1}
  #allocation0 [shape = 'u32[]', space=smem, size = 0x4, offset = 0x4, fixed_abs, tag = 'smem constant byte address 0x4 - core index']
  #allocation1 [shape = 'u32[144,128]{1,0:T(1,128)}', space=vmem, size = 0x12000, scoped, tag = 'internal scratch']
  %s0 = inlined_call_operand.vmem [shape: f32[2,4,128,8], index: 0, kind: input, shape index: {}]
  %s1 = inlined_call_operand.vmem [shape: f32[2,4,128,8], index: 1, kind: input, shape index: {}]
  %s2 = inlined_call_operand.vmem [shape: f32[2,128,128], index: 2, kind: input, shape index: {}]
  %s3 = inlined_call_operand.vmem [shape: f32[2,1,128], index: 3, kind: input, shape index: {}]
  %s4 = inlined_call_operand.hbm [shape: f32[2,4,128,128], index: 4, kind: output, shape index: {}]
  %s5 = sld [smem:[#allocation0]]
  $region49: #{tpu_custom_call.1} parent=0
    _
  %s7 = ssub.s32 1, %s5
  %s8 = scalar_select 0, %s7, %s5
  $region1: #{tpu_custom_call.1} parent=0
    #allocation2 [shape = 'u8[131072]{0}', space=vmem, size = 0x20000, scoped, tag = 'output window, operand 0']
    #allocation3 [shape = 's32[2]{0}', space=sflag, size = 0x8, scoped, tag = 'scoped memory for tpu_custom_call.1']
    %9 = vsyncpa [#allocation3], 0
    %s10 = scalar_lea.sflag [#allocation3], 1
    %11 = vsyncpa %s10, 0
    loop: start=0, step=1, limit=10
    $region2: #{tpu_custom_call.1} parent=1 // loop_pre_header
      _
    $region3: #{tpu_custom_call.1} parent=1 // loop_header
      %s13 = sphi 0, %s17
      %p14 = scmp.ge.s32.totalorder %s13, 10
      %s20 = sphi 0, %s39
      %s21 = sphi 0, %s35
      %s22 = sphi 0, %s31
      %s23 = sphi 0, %s20
      %s24 = sphi 0, %s21
      %s25 = sphi 0, %s22
      %s26 = sphi 0, %s23
      %s27 = sphi 0, %s24
      %s28 = sphi 0, %s25
      %s46 = sphi 0, %s48
      %s49 = sphi 0, %s46
      %s50 = sphi 0, %s49
      %s66 = sphi 0, %s50
      %s74 = sphi 0, %s76
      %s77 = sphi 0, %s74
      %s78 = sphi 0, %s77
      %s94 = sphi 0, %s78
      %s102 = sphi 0, %s104
      %s105 = sphi 0, %s102
      %s106 = sphi 0, %s105
      %s122 = sphi 0, %s106
      %s128 = sphi 0, %s130
      %s131 = sphi 0, %s128
      %s132 = sphi 0, %s131
      %s148 = sphi 0, %s132
      %s158 = sphi 0, %s160
      %s161 = sphi 0, %s158
      %s162 = sphi 0, %s161
      %s178 = sphi 0, %s162
    $region4: #{tpu_custom_call.1} parent=1 // loop_header_branch
      %16 = sbr.rel (%p14) target = $region8
    $region5: #{tpu_custom_call.1} parent=1 // loop_body
      %s18 = ssub.s32 %s13, 1
      %s19 = ssub.s32 %s13, 2
      %s29 = sadd.s32 1, %s22
      %p30 = scmp.ge.s32.totalorder %s29, 4
      %s31 = scalar_select %p30, 0, %s29
      %s32 = sadd.s32 1, %s21
      %s33 = scalar_select %p30, %s32, %s21
      %p34 = scmp.ge.s32.totalorder %s33, 1
      %s35 = scalar_select %p34, 0, %s33
      %s36 = sadd.s32 1, %s20
      %s37 = scalar_select %p34, %s36, %s20
      %p38 = scmp.ge.s32.totalorder %s37, 2
      %s39 = scalar_select %p38, 0, %s37
      %s40 = ssub.s32 %s20, %s39
      %s41 = ssub.s32 %s22, %s31
      %s42 = sor.u32 %s40, %s41
      %s43 = ssub.s32 %s21, %s35
      %s44 = sor.u32 %s42, %s43
      %p45 = scmp.eq.s32.totalorder %s44, 0
      %s47 = sadd.s32 %s46, 1
      %s48 = scalar_select %p45, %s46, %s47
      %p51 = pneg %p45
      %p52 = scmp.eq.s32.totalorder %s13, 7
      %p53 = por %p51, %p52
      %p54 = scmp.ne.s32.totalorder %s46, %s49
      %p55 = scmp.eq.s32.totalorder %s13, 0
      %p56 = por %p54, %p55
      %p57 = scmp.ne.s32.totalorder %s46, %s49
      %p58 = scmp.eq.s32.totalorder %s18, 7
      %p59 = por %p57, %p58
      %p60 = scmp.ne.s32.totalorder %s49, %s50
      %p61 = scmp.eq.s32.totalorder %s18, 0
      %p62 = por %p60, %p61
      %p63 = scmp.ne.s32.totalorder %s49, %s50
      %p64 = scmp.eq.s32.totalorder %s19, 7
      %p65 = por %p63, %p64
      %p67 = scmp.ne.s32.totalorder %s50, %s66
      %p68 = scmp.eq.s32.totalorder %s19, 0
      %p69 = por %p67, %p68
      %s70 = ssub.s32 %s20, %s39
      %s71 = ssub.s32 %s22, %s31
      %s72 = sor.u32 %s70, %s71
      %p73 = scmp.eq.s32.totalorder %s72, 0
      %s75 = sadd.s32 %s74, 1
      %s76 = scalar_select %p73, %s74, %s75
      %p79 = pneg %p73
      %p80 = scmp.eq.s32.totalorder %s13, 7
      %p81 = por %p79, %p80
      %p82 = scmp.ne.s32.totalorder %s74, %s77
      %p83 = scmp.eq.s32.totalorder %s13, 0
      %p84 = por %p82, %p83
      %p85 = scmp.ne.s32.totalorder %s74, %s77
      %p86 = scmp.eq.s32.totalorder %s18, 7
      %p87 = por %p85, %p86
      %p88 = scmp.ne.s32.totalorder %s77, %s78
      %p89 = scmp.eq.s32.totalorder %s18, 0
      %p90 = por %p88, %p89
      %p91 = scmp.ne.s32.totalorder %s77, %s78
      %p92 = scmp.eq.s32.totalorder %s19, 7
      %p93 = por %p91, %p92
      %p95 = scmp.ne.s32.totalorder %s78, %s94
      %p96 = scmp.eq.s32.totalorder %s19, 0
      %p97 = por %p95, %p96
      %s98 = ssub.s32 %s20, %s39
      %s99 = ssub.s32 %s21, %s35
      %s100 = sor.u32 %s98, %s99
      %p101 = scmp.eq.s32.totalorder %s100, 0
      %s103 = sadd.s32 %s102, 1
      %s104 = scalar_select %p101, %s102, %s103
      %p107 = pneg %p101
      %p108 = scmp.eq.s32.totalorder %s13, 7
      %p109 = por %p107, %p108
      %p110 = scmp.ne.s32.totalorder %s102, %s105
      %p111 = scmp.eq.s32.totalorder %s13, 0
      %p112 = por %p110, %p111
      %p113 = scmp.ne.s32.totalorder %s102, %s105
      %p114 = scmp.eq.s32.totalorder %s18, 7
      %p115 = por %p113, %p114
      %p116 = scmp.ne.s32.totalorder %s105, %s106
      %p117 = scmp.eq.s32.totalorder %s18, 0
      %p118 = por %p116, %p117
      %p119 = scmp.ne.s32.totalorder %s105, %s106
      %p120 = scmp.eq.s32.totalorder %s19, 7
      %p121 = por %p119, %p120
      %p123 = scmp.ne.s32.totalorder %s106, %s122
      %p124 = scmp.eq.s32.totalorder %s19, 0
      %p125 = por %p123, %p124
      %s126 = ssub.s32 %s20, %s39
      %p127 = scmp.eq.s32.totalorder %s126, 0
      %s129 = sadd.s32 %s128, 1
      %s130 = scalar_select %p127, %s128, %s129
      %p133 = pneg %p127
      %p134 = scmp.eq.s32.totalorder %s13, 7
      %p135 = por %p133, %p134
      %p136 = scmp.ne.s32.totalorder %s128, %s131
      %p137 = scmp.eq.s32.totalorder %s13, 0
      %p138 = por %p136, %p137
      %p139 = scmp.ne.s32.totalorder %s128, %s131
      %p140 = scmp.eq.s32.totalorder %s18, 7
      %p141 = por %p139, %p140
      %p142 = scmp.ne.s32.totalorder %s131, %s132
      %p143 = scmp.eq.s32.totalorder %s18, 0
      %p144 = por %p142, %p143
      %p145 = scmp.ne.s32.totalorder %s131, %s132
      %p146 = scmp.eq.s32.totalorder %s19, 7
      %p147 = por %p145, %p146
      %p149 = scmp.ne.s32.totalorder %s132, %s148
      %p150 = scmp.eq.s32.totalorder %s19, 0
      %p151 = por %p149, %p150
      %s152 = ssub.s32 %s20, %s39
      %s153 = ssub.s32 %s22, %s31
      %s154 = sor.u32 %s152, %s153
      %s155 = ssub.s32 %s21, %s35
      %s156 = sor.u32 %s154, %s155
      %p157 = scmp.eq.s32.totalorder %s156, 0
      %s159 = sadd.s32 %s158, 1
      %s160 = scalar_select %p157, %s158, %s159
      %p163 = pneg %p157
      %p164 = scmp.eq.s32.totalorder %s13, 7
      %p165 = por %p163, %p164
      %p166 = scmp.ne.s32.totalorder %s158, %s161
      %p167 = scmp.eq.s32.totalorder %s13, 0
      %p168 = por %p166, %p167
      %p169 = scmp.ne.s32.totalorder %s158, %s161
      %p170 = scmp.eq.s32.totalorder %s18, 7
      %p171 = por %p169, %p170
      %p172 = scmp.ne.s32.totalorder %s161, %s162
      %p173 = scmp.eq.s32.totalorder %s18, 0
      %p174 = por %p172, %p173
      %p175 = scmp.ne.s32.totalorder %s161, %s162
      %p176 = scmp.eq.s32.totalorder %s19, 7
      %p177 = por %p175, %p176
      %p179 = scmp.ne.s32.totalorder %s162, %s178
      %p180 = scmp.eq.s32.totalorder %s19, 0
      %p181 = por %p179, %p180
      %p182 = scmp.le.s32.totalorder 1, %s13
      %p183 = scmp.lt.s32.totalorder %s13, 9
      %p184 = pnand %p182, %p183
      %p185 = pneg %p184
      // Predicated region
      $region9: #{tpu_custom_call.1} parent=5 // pred_check
        _
      $region10: #{tpu_custom_call.1} parent=5 // pred_check_branch
        %187 = sbr.rel (%p184) target = $region12
      $region11: #{tpu_custom_call.1} parent=5 // pred_region
        %s188 = ssub.s32 %s13, 1
      $region12: #{tpu_custom_call.1} parent=5 // pred_fallthru
        _
      %p189 = scmp.lt.s32.totalorder %s13, 8
      // Predicated region
      $region13: #{tpu_custom_call.1} parent=5 // pred_check
        %p190 = pneg %p189
      $region14: #{tpu_custom_call.1} parent=5 // pred_check_branch
        %192 = sbr.rel (%p190) target = $region16
      $region15: #{tpu_custom_call.1} parent=5 // pred_region
        // Predicated region
        $region17: #{tpu_custom_call.1} parent=15 // pred_check
          %p193 = pneg %p56
        $region18: #{tpu_custom_call.1} parent=15 // pred_check_branch
          %195 = sbr.rel (%p193) target = $region20
        $region19: #{tpu_custom_call.1} parent=15 // pred_region
          %s196 = smul.u32 16, %s21
          %p197 = scmp.lt.s32.totalorder %s20, 1
          %s198 = scalar_select %p197, %s20, 1
          %p199 = scmp.lt.s32.totalorder %s22, 3
          %s200 = scalar_select %p199, %s22, 3
          %p201 = scmp.lt.s32.totalorder %s196, 15
          %s202 = scalar_select %p201, %s196, 15
          %s203 = smul.addr %s200, 16
          %s204 = sadd.s32 %s202, %s203
          %s205 = smul.addr %s198, 64
          %s206 = sadd.s32 %s204, %s205
          %s207 = smul.addr %s206, 8
          %s208 = scalar_lea.vmem %s0, %s207
          %s209 = smul.u32 16, %s21
        $region20: #{tpu_custom_call.1} parent=15 // pred_fallthru
          _
        // Predicated region
        $region21: #{tpu_custom_call.1} parent=15 // pred_check
          %p210 = pneg %p84
        $region22: #{tpu_custom_call.1} parent=15 // pred_check_branch
          %212 = sbr.rel (%p210) target = $region24
        $region23: #{tpu_custom_call.1} parent=15 // pred_region
          %p213 = scmp.lt.s32.totalorder %s20, 1
          %s214 = scalar_select %p213, %s20, 1
          %p215 = scmp.lt.s32.totalorder %s22, 3
          %s216 = scalar_select %p215, %s22, 3
          %s217 = smul.addr %s216, 16
          %s218 = smul.addr %s214, 64
          %s219 = sadd.s32 %s217, %s218
          %s220 = smul.addr %s219, 8
          %s221 = scalar_lea.vmem %s1, %s220
        $region24: #{tpu_custom_call.1} parent=15 // pred_fallthru
          _
        // Predicated region
        $region25: #{tpu_custom_call.1} parent=15 // pred_check
          %p222 = pneg %p112
        $region26: #{tpu_custom_call.1} parent=15 // pred_check_branch
          %224 = sbr.rel (%p222) target = $region28
        $region27: #{tpu_custom_call.1} parent=15 // pred_region
          %s225 = smul.u32 16, %s21
          %p226 = scmp.lt.s32.totalorder %s20, 1
          %s227 = scalar_select %p226, %s20, 1
          %p228 = scmp.lt.s32.totalorder %s225, 15
          %s229 = scalar_select %p228, %s225, 15
          %s230 = smul.addr %s227, 16
          %s231 = sadd.s32 %s229, %s230
          %s232 = smul.addr %s231, 8
          %s233 = scalar_lea.vmem %s2, %s232
          %s234 = smul.u32 16, %s21
        $region28: #{tpu_custom_call.1} parent=15 // pred_fallthru
          _
        // Predicated region
        $region29: #{tpu_custom_call.1} parent=15 // pred_check
          %p235 = pneg %p138
        $region30: #{tpu_custom_call.1} parent=15 // pred_check_branch
          %237 = sbr.rel (%p235) target = $region32
        $region31: #{tpu_custom_call.1} parent=15 // pred_region
          %p238 = scmp.lt.s32.totalorder %s20, 1
          %s239 = scalar_select %p238, %s20, 1
          %s240 = scalar_lea.vmem %s3, %s239
        $region32: #{tpu_custom_call.1} parent=15 // pred_fallthru
          _
      $region16: #{tpu_custom_call.1} parent=5 // pred_fallthru
        _
      %p241 = scmp.le.s32.totalorder 1, %s13
      %p242 = scmp.lt.s32.totalorder %s13, 9
      %p243 = pnand %p241, %p242
      %p244 = pneg %p243
      // Predicated region
      $region33: #{tpu_custom_call.1} parent=5 // pred_check
        _
      $region34: #{tpu_custom_call.1} parent=5 // pred_check_branch
        %246 = sbr.rel (%p243) target = $region36
      $region35: #{tpu_custom_call.1} parent=5 // pred_region
        %s247 = ssub.s32 %s13, 1
        %s248 = smul.u32 16, %s24
        %p249 = scmp.lt.s32.totalorder %s23, 1
        %s250 = scalar_select %p249, %s23, 1
        %p251 = scmp.lt.s32.totalorder %s25, 3
        %s252 = scalar_select %p251, %s25, 3
        %p253 = scmp.lt.s32.totalorder %s248, 15
        %s254 = scalar_select %p253, %s248, 15
        %s255 = smul.addr %s252, 16
        %s256 = sadd.s32 %s254, %s255
        %s257 = smul.addr %s250, 64
        %s258 = sadd.s32 %s256, %s257
        %s259 = smul.addr %s258, 8
        %s260 = scalar_lea.vmem %s0, %s259
        %p261 = pneg %p62
        %p262 = pneg %p59
        %p263 = scmp.lt.s32.totalorder %s23, 1
        %s264 = scalar_select %p263, %s23, 1
        %p265 = scmp.lt.s32.totalorder %s25, 3
        %s266 = scalar_select %p265, %s25, 3
        %s267 = smul.addr %s266, 16
        %s268 = smul.addr %s264, 64
        %s269 = sadd.s32 %s267, %s268
        %s270 = smul.addr %s269, 8
        %s271 = scalar_lea.vmem %s1, %s270
        %p272 = pneg %p90
        %p273 = pneg %p87
        %s274 = smul.u32 16, %s24
        %p275 = scmp.lt.s32.totalorder %s23, 1
        %s276 = scalar_select %p275, %s23, 1
        %p277 = scmp.lt.s32.totalorder %s274, 15
        %s278 = scalar_select %p277, %s274, 15
        %s279 = smul.addr %s276, 16
        %s280 = sadd.s32 %s278, %s279
        %s281 = smul.addr %s280, 8
        %s282 = scalar_lea.vmem %s2, %s281
        %p283 = pneg %p118
        %p284 = pneg %p115
        %p285 = scmp.lt.s32.totalorder %s23, 1
        %s286 = scalar_select %p285, %s23, 1
        %s287 = scalar_lea.vmem %s3, %s286
        %p288 = pneg %p144
        %p289 = pneg %p141
        %p290 = pneg %p174
        %p291 = pneg %p171
        %s292 = sand.u32 %s161, 1
        %s293 = scalar_lea.sflag [#allocation3], %s292
        %s294 = sand.u32 %s161, 1
        %s295 = smul.addr %s294, 128
        %s296 = scalar_lea.vmem [#allocation2], %s295
        %s297 = smul.u32 16, %s24
        %p298 = scmp.lt.s32.totalorder %s23, 1
        %s299 = scalar_select %p298, %s23, 1
        %p300 = scmp.lt.s32.totalorder %s25, 3
        %s301 = scalar_select %p300, %s25, 3
        %p302 = scmp.lt.s32.totalorder %s297, 15
        %s303 = scalar_select %p302, %s297, 15
        %s304 = smul.addr %s301, 16
        %s305 = sadd.s32 %s303, %s304
        %s306 = smul.addr %s299, 64
        %s307 = sadd.s32 %s305, %s306
        %s308 = smul.addr %s307, 8
        %s309 = scalar_lea.vmem %s0, %s308
        %s310 = smul.u32 16, %s24
        %p311 = scmp.lt.s32.totalorder %s23, 1
        %s312 = scalar_select %p311, %s23, 1
        %p313 = scmp.lt.s32.totalorder %s25, 3
        %s314 = scalar_select %p313, %s25, 3
        %s315 = smul.addr %s314, 16
        %s316 = smul.addr %s312, 64
        %s317 = sadd.s32 %s315, %s316
        %s318 = smul.addr %s317, 8
        %s319 = scalar_lea.vmem %s1, %s318
        %s320 = smul.u32 16, %s24
        %p321 = scmp.lt.s32.totalorder %s23, 1
        %s322 = scalar_select %p321, %s23, 1
        %p323 = scmp.lt.s32.totalorder %s320, 15
        %s324 = scalar_select %p323, %s320, 15
        %s325 = smul.addr %s322, 16
        %s326 = sadd.s32 %s324, %s325
        %s327 = smul.addr %s326, 8
        %s328 = scalar_lea.vmem %s2, %s327
        %s329 = smul.u32 16, %s24
        %p330 = scmp.lt.s32.totalorder %s23, 1
        %s331 = scalar_select %p330, %s23, 1
        %s332 = scalar_lea.vmem %s3, %s331
        %s333 = smul.u32 16, %s24
        %v334 = vld [vmem:[%s309] sm:$0xff]
        %v335 = vld [vmem:[%s309 + $0x8] sm:$0xff]
        %v336 = vld [vmem:[%s309 + $0x10] sm:$0xff]
        %v337 = vld [vmem:[%s309 + $0x18] sm:$0xff]
        %v338 = vld [vmem:[%s309 + $0x20] sm:$0xff]
        %v339 = vld [vmem:[%s309 + $0x28] sm:$0xff]
        %v340 = vld [vmem:[%s309 + $0x30] sm:$0xff]
        %v341 = vld [vmem:[%s309 + $0x38] sm:$0xff]
        %v342 = vld [vmem:[%s309 + $0x40] sm:$0xff]
        %v343 = vld [vmem:[%s309 + $0x48] sm:$0xff]
        %v344 = vld [vmem:[%s309 + $0x50] sm:$0xff]
        %v345 = vld [vmem:[%s309 + $0x58] sm:$0xff]
        %v346 = vld [vmem:[%s309 + $0x60] sm:$0xff]
        %v347 = vld [vmem:[%s309 + $0x68] sm:$0xff]
        %v348 = vld [vmem:[%s309 + $0x70] sm:$0xff]
        %v349 = vld [vmem:[%s309 + $0x78] sm:$0xff]
        %v350 = vld [vmem:[%s319] sm:$0xff]
        %v351 = vld [vmem:[%s319 + $0x8] sm:$0xff]
        %v352 = vld [vmem:[%s319 + $0x10] sm:$0xff]
        %v353 = vld [vmem:[%s319 + $0x18] sm:$0xff]
        %v354 = vld [vmem:[%s319 + $0x20] sm:$0xff]
        %v355 = vld [vmem:[%s319 + $0x28] sm:$0xff]
        %v356 = vld [vmem:[%s319 + $0x30] sm:$0xff]
        %v357 = vld [vmem:[%s319 + $0x38] sm:$0xff]
        %v358 = vld [vmem:[%s319 + $0x40] sm:$0xff]
        %v359 = vld [vmem:[%s319 + $0x48] sm:$0xff]
        %v360 = vld [vmem:[%s319 + $0x50] sm:$0xff]
        %v361 = vld [vmem:[%s319 + $0x58] sm:$0xff]
        %v362 = vld [vmem:[%s319 + $0x60] sm:$0xff]
        %v363 = vld [vmem:[%s319 + $0x68] sm:$0xff]
        %v364 = vld [vmem:[%s319 + $0x70] sm:$0xff]
        %v365 = vld [vmem:[%s319 + $0x78] sm:$0xff]
        %v366 = vld [vmem:[%s328] sm:$0xff]
        %v367 = vld [vmem:[%s328 + $0x8] sm:$0xff]
        %v368 = vld [vmem:[%s328 + $0x10] sm:$0xff]
        %v369 = vld [vmem:[%s328 + $0x18] sm:$0xff]
        %v370 = vld [vmem:[%s328 + $0x20] sm:$0xff]
        %v371 = vld [vmem:[%s328 + $0x28] sm:$0xff]
        %v372 = vld [vmem:[%s328 + $0x30] sm:$0xff]
        %v373 = vld [vmem:[%s328 + $0x38] sm:$0xff]
        %v374 = vld [vmem:[%s328 + $0x40] sm:$0xff]
        %v375 = vld [vmem:[%s328 + $0x48] sm:$0xff]
        %v376 = vld [vmem:[%s328 + $0x50] sm:$0xff]
        %v377 = vld [vmem:[%s328 + $0x58] sm:$0xff]
        %v378 = vld [vmem:[%s328 + $0x60] sm:$0xff]
        %v379 = vld [vmem:[%s328 + $0x68] sm:$0xff]
        %v380 = vld [vmem:[%s328 + $0x70] sm:$0xff]
        %v381 = vld [vmem:[%s328 + $0x78] sm:$0xff]
        %v382 = vld [vmem:[%s332] sm:$0x1]
        %vm383 = vcmp.gt.f32.partialorder %v382, 0.0
        %vm384 = vcmp.ge.f32.partialorder %v382, 0.0
        %v385 = vsel %vm384, 1e-10, 0.0
        %vm386 = vcmask 64512
        %v388 = vsel %vm386, %v334, 0
        %v391 = vsel %vm386, %v335, 0
        %v394 = vsel %vm386, %v336, 0
        %v397 = vsel %vm386, %v337, 0
        %v400 = vsel %vm386, %v338, 0
        %v403 = vsel %vm386, %v339, 0
        %v406 = vsel %vm386, %v340, 0
        %v409 = vsel %vm386, %v341, 0
        %v412 = vsel %vm386, %v342, 0
        %v415 = vsel %vm386, %v343, 0
        %v418 = vsel %vm386, %v344, 0
        %v421 = vsel %vm386, %v345, 0
        %v424 = vsel %vm386, %v346, 0
        %v427 = vsel %vm386, %v347, 0
        %v430 = vsel %vm386, %v348, 0
        %v433 = vsel %vm386, %v349, 0
        %v436 = vsel %vm386, %v350, 0
        %v439 = vsel %vm386, %v351, 0
        %v442 = vsel %vm386, %v352, 0
        %v445 = vsel %vm386, %v353, 0
        %v448 = vsel %vm386, %v354, 0
        %v451 = vsel %vm386, %v355, 0
        %v454 = vsel %vm386, %v356, 0
        %v457 = vsel %vm386, %v357, 0
        %v460 = vsel %vm386, %v358, 0
        %v463 = vsel %vm386, %v359, 0
        %v466 = vsel %vm386, %v360, 0
        %v469 = vsel %vm386, %v361, 0
        %v472 = vsel %vm386, %v362, 0
        %v475 = vsel %vm386, %v363, 0
        %v478 = vsel %vm386, %v364, 0
        %v481 = vsel %vm386, %v365, 0
        %483 = vmatprep.subr.mxu0 0.0
        %484 = vmatpush1.xpose.msra.mxu0 %v436
        %485 = vmatprep.subr.mxu0 0.0
        %486 = vmatpush1.xpose.msra.mxu0 %v439
        %487 = vmatprep.subr.mxu0 0.0
        %488 = vmatpush1.xpose.msra.mxu0 %v442
        %489 = vmatprep.subr.mxu0 0.0
        %490 = vmatpush1.xpose.msra.mxu0 %v445
        %491 = vmatprep.subr.mxu0 0.0
        %492 = vmatpush1.xpose.msra.mxu0 %v448
        %493 = vmatprep.subr.mxu0 0.0
        %494 = vmatpush1.xpose.msra.mxu0 %v451
        %495 = vmatprep.subr.mxu0 0.0
        %496 = vmatpush1.xpose.msra.mxu0 %v454
        %497 = vmatprep.subr.mxu0 0.0
        %498 = vmatpush1.xpose.msra.mxu0 %v457
        %499 = vmatprep.subr.mxu0 0.0
        %500 = vmatpush1.xpose.msra.mxu0 %v460
        %501 = vmatprep.subr.mxu0 0.0
        %502 = vmatpush1.xpose.msra.mxu0 %v463
        %503 = vmatprep.subr.mxu0 0.0
        %504 = vmatpush1.xpose.msra.mxu0 %v466
        %505 = vmatprep.subr.mxu0 0.0
        %506 = vmatpush1.xpose.msra.mxu0 %v469
        %507 = vmatprep.subr.mxu0 0.0
        %508 = vmatpush1.xpose.msra.mxu0 %v472
        %509 = vmatprep.subr.mxu0 0.0
        %510 = vmatpush1.xpose.msra.mxu0 %v475
        %511 = vmatprep.subr.mxu0 0.0
        %512 = vmatpush1.xpose.msra.mxu0 %v478
        %513 = vmatprep.subr.mxu0 0.0
        %514 = vmatpush1.xpose.msra.mxu0 %v481
        %515 = vmatprep.subr.mxu0 0.0
        %516 = vmatpush1.xpose.msra.mxu0 0.0
        %517 = vmatprep.subr.mxu0 0.0
        %518 = vmatpush1.xpose.msra.mxu0 0.0
        %519 = vmatprep.subr.mxu0 0.0
        %520 = vmatpush1.xpose.msra.mxu0 0.0
        %521 = vmatprep.subr.mxu0 0.0
        %522 = vmatpush1.xpose.msra.mxu0 0.0
        %523 = vmatprep.subr.mxu0 0.0
        %524 = vmatpush1.xpose.msra.mxu0 0.0
        %525 = vmatprep.subr.mxu0 0.0
        %526 = vmatpush1.xpose.msra.mxu0 0.0
        %527 = vmatprep.subr.mxu0 0.0
        %528 = vmatpush1.xpose.msra.mxu0 0.0
        %529 = vmatprep.subr.mxu0 0.0
        %530 = vmatpush1.xpose.msra.mxu0 0.0
        %531 = vmatprep.subr.mxu0 0.0
        %532 = vmatpush1.xpose.msra.mxu0 0.0
        %533 = vmatprep.subr.mxu0 0.0
        %534 = vmatpush1.xpose.msra.mxu0 0.0
        %535 = vmatprep.subr.mxu0 0.0
        %536 = vmatpush1.xpose.msra.mxu0 0.0
        %537 = vmatprep.subr.mxu0 0.0
        %538 = vmatpush1.xpose.msra.mxu0 0.0
        %539 = vmatprep.subr.mxu0 0.0
        %540 = vmatpush1.xpose.msra.mxu0 0.0
        %541 = vmatprep.subr.mxu0 0.0
        %542 = vmatpush1.xpose.msra.mxu0 0.0
        %543 = vmatprep.subr.mxu0 0.0
        %544 = vmatpush1.xpose.msra.mxu0 0.0
        %545 = vmatprep.subr.mxu0 0.0
        %546 = vmatpush1.xpose.msra.mxu0 0.0
        %547 = vmatprep.mubr.f32.mxu0 0.0
        %548 = vmatmul.mubr.f32.gmra.mrb[0].mxu0 %v388
        %v549 = vpop.f32.mrb[0].mxu0
        %v550 = vadd.f32 0.0, %v549
        %v551 = vpop.f32.mrb[0].mxu0
        %552 = vmatprep.mubr.f32.mxu0 0.0
        %553 = vmatmul.mubr.f32.gmra.mrb[0].mxu0 %v391
        %v554 = vpop.f32.mrb[0].mxu0
        %v555 = vadd.f32 0.0, %v554
        %v556 = vpop.f32.mrb[0].mxu0
        %557 = vmatprep.mubr.f32.mxu0 0.0
        %558 = vmatmul.mubr.f32.gmra.mrb[0].mxu0 %v394
        %v559 = vpop.f32.mrb[0].mxu0
        %v560 = vadd.f32 0.0, %v559
        %v561 = vpop.f32.mrb[0].mxu0
        %562 = vmatprep.mubr.f32.mxu0 0.0
        %563 = vmatmul.mubr.f32.gmra.mrb[0].mxu0 %v397
        %v564 = vpop.f32.mrb[0].mxu0
        %v565 = vadd.f32 0.0, %v564
        %v566 = vpop.f32.mrb[0].mxu0
        %567 = vmatprep.mubr.f32.mxu0 0.0
        %568 = vmatmul.mubr.f32.gmra.mrb[0].mxu0 %v400
        %v569 = vpop.f32.mrb[0].mxu0
        %v570 = vadd.f32 0.0, %v569
        %v571 = vpop.f32.mrb[0].mxu0
        %572 = vmatprep.mubr.f32.mxu0 0.0
        %573 = vmatmul.mubr.f32.gmra.mrb[0].mxu0 %v403
        %v574 = vpop.f32.mrb[0].mxu0
        %v575 = vadd.f32 0.0, %v574
        %v576 = vpop.f32.mrb[0].mxu0
        %577 = vmatprep.mubr.f32.mxu0 0.0
        %578 = vmatmul.mubr.f32.gmra.mrb[0].mxu0 %v406
        %v579 = vpop.f32.mrb[0].mxu0
        %v580 = vadd.f32 0.0, %v579
        %v581 = vpop.f32.mrb[0].mxu0
        %582 = vmatprep.mubr.f32.mxu0 0.0
        %583 = vmatmul.mubr.f32.gmra.mrb[0].mxu0 %v409
        %v584 = vpop.f32.mrb[0].mxu0
        %v585 = vadd.f32 0.0, %v584
        %v586 = vpop.f32.mrb[0].mxu0
        %587 = vmatprep.mubr.f32.mxu0 0.0
        %588 = vmatmul.mubr.f32.gmra.mrb[0].mxu0 %v412
        %v589 = vpop.f32.mrb[0].mxu0
        %v590 = vadd.f32 0.0, %v589
        %v591 = vpop.f32.mrb[0].mxu0
        %592 = vmatprep.mubr.f32.mxu0 0.0
        %593 = vmatmul.mubr.f32.gmra.mrb[0].mxu0 %v415
        %v594 = vpop.f32.mrb[0].mxu0
        %v595 = vadd.f32 0.0, %v594
        %v596 = vpop.f32.mrb[0].mxu0
        %597 = vmatprep.mubr.f32.mxu0 0.0
        %598 = vmatmul.mubr.f32.gmra.mrb[0].mxu0 %v418
        %v599 = vpop.f32.mrb[0].mxu0
        %v600 = vadd.f32 0.0, %v599
        %v601 = vpop.f32.mrb[0].mxu0
        %602 = vmatprep.mubr.f32.mxu0 0.0
        %603 = vmatmul.mubr.f32.gmra.mrb[0].mxu0 %v421
        %v604 = vpop.f32.mrb[0].mxu0
        %v605 = vadd.f32 0.0, %v604
        %v606 = vpop.f32.mrb[0].mxu0
        %607 = vmatprep.mubr.f32.mxu0 0.0
        %608 = vmatmul.mubr.f32.gmra.mrb[0].mxu0 %v424
        %v609 = vpop.f32.mrb[0].mxu0
        %v610 = vadd.f32 0.0, %v609
        %v611 = vpop.f32.mrb[0].mxu0
        %612 = vmatprep.mubr.f32.mxu0 0.0
        %613 = vmatmul.mubr.f32.gmra.mrb[0].mxu0 %v427
        %v614 = vpop.f32.mrb[0].mxu0
        %v615 = vadd.f32 0.0, %v614
        %v616 = vpop.f32.mrb[0].mxu0
        %617 = vmatprep.mubr.f32.mxu0 0.0
        %618 = vmatmul.mubr.f32.gmra.mrb[0].mxu0 %v430
        %v619 = vpop.f32.mrb[0].mxu0
        %v620 = vadd.f32 0.0, %v619
        %v621 = vpop.f32.mrb[0].mxu0
        %622 = vmatprep.mubr.f32.mxu0 0.0
        %623 = vmatmul.mubr.f32.gmra.mrb[0].mxu0 %v433
        %v624 = vpop.f32.mrb[0].mxu0
        %v625 = vadd.f32 0.0, %v624
        %v626 = vpop.f32.mrb[0].mxu0
        %627 = vdwg.mxu0
        %v628 = vsel %vm383, 1.0, 0.0
        %vm629 = vcmask 1040384
        %v630 = vsel %vm629, %v628, 0.0
        %631 = vadd.xlane.f32.xlu0 %v630
        %v632 = vpop.xlane.xlu0 %631
        %v633 = vadd.f32 %v632, 0.01
        %v634 = vsel %vm383, 1, 0
        %v635 = vlaneseq
        %v636 = vshrl.u32 %v635, 7
        %v637 = vsub.s32 0, %v636
        %v638 = vrot.slane %v634, %v637
        %vm639 = vcmp.eq.s32.totalorder %v638, 1
        %v640 = vsel %vm639, %v550, 0.0
        %v641 = vsel %vm639, %v555, 0.0
        %v642 = vsel %vm639, %v560, 0.0
        %v643 = vsel %vm639, %v565, 0.0
        %v644 = vsel %vm639, %v570, 0.0
        %v645 = vsel %vm639, %v575, 0.0
        %v646 = vsel %vm639, %v580, 0.0
        %v647 = vsel %vm639, %v585, 0.0
        %v648 = vsel %vm639, %v590, 0.0
        %v649 = vsel %vm639, %v595, 0.0
        %v650 = vsel %vm639, %v600, 0.0
        %v651 = vsel %vm639, %v605, 0.0
        %v652 = vsel %vm639, %v610, 0.0
        %v653 = vsel %vm639, %v615, 0.0
        %v654 = vsel %vm639, %v620, 0.0
        %v655 = vsel %vm639, %v625, 0.0
        %656 = vadd.xlane.f32.xlu0 %v640
        %v657 = vpop.xlane.xlu0 %656
        %658 = vadd.xlane.f32.xlu0 %v641
        %v659 = vpop.xlane.xlu0 %658
        %660 = vadd.xlane.f32.xlu0 %v642
        %v661 = vpop.xlane.xlu0 %660
        %662 = vadd.xlane.f32.xlu0 %v643
        %v663 = vpop.xlane.xlu0 %662
        %664 = vadd.xlane.f32.xlu0 %v644
        %v665 = vpop.xlane.xlu0 %664
        %666 = vadd.xlane.f32.xlu0 %v645
        %v667 = vpop.xlane.xlu0 %666
        %668 = vadd.xlane.f32.xlu0 %v646
        %v669 = vpop.xlane.xlu0 %668
        %670 = vadd.xlane.f32.xlu0 %v647
        %v671 = vpop.xlane.xlu0 %670
        %672 = vadd.xlane.f32.xlu0 %v648
        %v673 = vpop.xlane.xlu0 %672
        %674 = vadd.xlane.f32.xlu0 %v649
        %v675 = vpop.xlane.xlu0 %674
        %676 = vadd.xlane.f32.xlu0 %v650
        %v677 = vpop.xlane.xlu0 %676
        %678 = vadd.xlane.f32.xlu0 %v651
        %v679 = vpop.xlane.xlu0 %678
        %680 = vadd.xlane.f32.xlu0 %v652
        %v681 = vpop.xlane.xlu0 %680
        %682 = vadd.xlane.f32.xlu0 %v653
        %v683 = vpop.xlane.xlu0 %682
        %684 = vadd.xlane.f32.xlu0 %v654
        %v685 = vpop.xlane.xlu0 %684
        %686 = vadd.xlane.f32.xlu0 %v655
        %v687 = vpop.xlane.xlu0 %686
        %v688 = vlaneseq
        %v689 = vshrl.u32 %v688, 7
        %v690 = vsub.s32 0, %v689
        %v691 = vrot.slane %v633, %v690
        %v692 = vrcp.pop %v691
        %v693 = vmul.f32 %v657, %v692
        %v694 = vmul.f32 %v659, %v692
        %v695 = vmul.f32 %v661, %v692
        %v696 = vmul.f32 %v663, %v692
        %v697 = vmul.f32 %v665, %v692
        %v698 = vmul.f32 %v667, %v692
        %v699 = vmul.f32 %v669, %v692
        %v700 = vmul.f32 %v671, %v692
        %v701 = vmul.f32 %v673, %v692
        %v702 = vmul.f32 %v675, %v692
        %v703 = vmul.f32 %v677, %v692
        %v704 = vmul.f32 %v679, %v692
        %v705 = vmul.f32 %v681, %v692
        %v706 = vmul.f32 %v683, %v692
        %v707 = vmul.f32 %v685, %v692
        %v708 = vmul.f32 %v687, %v692
        %v709 = vsub.f32 %v550, %v693
        %v710 = vsub.f32 %v555, %v694
        %v711 = vsub.f32 %v560, %v695
        %v712 = vsub.f32 %v565, %v696
        %v713 = vsub.f32 %v570, %v697
        %v714 = vsub.f32 %v575, %v698
        %v715 = vsub.f32 %v580, %v699
        %v716 = vsub.f32 %v585, %v700
        %v717 = vsub.f32 %v590, %v701
        %v718 = vsub.f32 %v595, %v702
        %v719 = vsub.f32 %v600, %v703
        %v720 = vsub.f32 %v605, %v704
        %v721 = vsub.f32 %v610, %v705
        %v722 = vsub.f32 %v615, %v706
        %v723 = vsub.f32 %v620, %v707
        %v724 = vsub.f32 %v625, %v708
        %v725 = vmul.f32 %v709, %v709
        %v726 = vmul.f32 %v710, %v710
        %v727 = vmul.f32 %v711, %v711
        %v728 = vmul.f32 %v712, %v712
        %v729 = vmul.f32 %v713, %v713
        %v730 = vmul.f32 %v714, %v714
        %v731 = vmul.f32 %v715, %v715
        %v732 = vmul.f32 %v716, %v716
        %v733 = vmul.f32 %v717, %v717
        %v734 = vmul.f32 %v718, %v718
        %v735 = vmul.f32 %v719, %v719
        %v736 = vmul.f32 %v720, %v720
        %v737 = vmul.f32 %v721, %v721
        %v738 = vmul.f32 %v722, %v722
        %v739 = vmul.f32 %v723, %v723
        %v740 = vmul.f32 %v724, %v724
        %v741 = vsel %vm639, %v725, 0.0
        %v742 = vsel %vm639, %v726, 0.0
        %v743 = vsel %vm639, %v727, 0.0
        %v744 = vsel %vm639, %v728, 0.0
        %v745 = vsel %vm639, %v729, 0.0
        %v746 = vsel %vm639, %v730, 0.0
        %v747 = vsel %vm639, %v731, 0.0
        %v748 = vsel %vm639, %v732, 0.0
        %v749 = vsel %vm639, %v733, 0.0
        %v750 = vsel %vm639, %v734, 0.0
        %v751 = vsel %vm639, %v735, 0.0
        %v752 = vsel %vm639, %v736, 0.0
        %v753 = vsel %vm639, %v737, 0.0
        %v754 = vsel %vm639, %v738, 0.0
        %v755 = vsel %vm639, %v739, 0.0
        %v756 = vsel %vm639, %v740, 0.0
        %757 = vadd.xlane.f32.xlu0 %v741
        %v758 = vpop.xlane.xlu0 %757
        %759 = vadd.xlane.f32.xlu0 %v742
        %v760 = vpop.xlane.xlu0 %759
        %761 = vadd.xlane.f32.xlu0 %v743
        %v762 = vpop.xlane.xlu0 %761
        %763 = vadd.xlane.f32.xlu0 %v744
        %v764 = vpop.xlane.xlu0 %763
        %765 = vadd.xlane.f32.xlu0 %v745
        %v766 = vpop.xlane.xlu0 %765
        %767 = vadd.xlane.f32.xlu0 %v746
        %v768 = vpop.xlane.xlu0 %767
        %769 = vadd.xlane.f32.xlu0 %v747
        %v770 = vpop.xlane.xlu0 %769
        %771 = vadd.xlane.f32.xlu0 %v748
        %v772 = vpop.xlane.xlu0 %771
        %773 = vadd.xlane.f32.xlu0 %v749
        %v774 = vpop.xlane.xlu0 %773
        %775 = vadd.xlane.f32.xlu0 %v750
        %v776 = vpop.xlane.xlu0 %775
        %777 = vadd.xlane.f32.xlu0 %v751
        %v778 = vpop.xlane.xlu0 %777
        %779 = vadd.xlane.f32.xlu0 %v752
        %v780 = vpop.xlane.xlu0 %779
        %781 = vadd.xlane.f32.xlu0 %v753
        %v782 = vpop.xlane.xlu0 %781
        %783 = vadd.xlane.f32.xlu0 %v754
        %v784 = vpop.xlane.xlu0 %783
        %785 = vadd.xlane.f32.xlu0 %v755
        %v786 = vpop.xlane.xlu0 %785
        %787 = vadd.xlane.f32.xlu0 %v756
        %v788 = vpop.xlane.xlu0 %787
        %v789 = vmul.f32 %v758, %v692
        %v790 = vmul.f32 %v760, %v692
        %v791 = vmul.f32 %v762, %v692
        %v792 = vmul.f32 %v764, %v692
        %v793 = vmul.f32 %v766, %v692
        %v794 = vmul.f32 %v768, %v692
        %v795 = vmul.f32 %v770, %v692
        %v796 = vmul.f32 %v772, %v692
        %v797 = vmul.f32 %v774, %v692
        %v798 = vmul.f32 %v776, %v692
        %v799 = vmul.f32 %v778, %v692
        %v800 = vmul.f32 %v780, %v692
        %v801 = vmul.f32 %v782, %v692
        %v802 = vmul.f32 %v784, %v692
        %v803 = vmul.f32 %v786, %v692
        %v804 = vmul.f32 %v788, %v692
        %v805 = vrsqrt.pop %v789
        %v806 = vrsqrt.pop %v790
        %v807 = vrsqrt.pop %v791
        %v808 = vrsqrt.pop %v792
        %v809 = vrsqrt.pop %v793
        %v810 = vrsqrt.pop %v794
        %v811 = vrsqrt.pop %v795
        %v812 = vrsqrt.pop %v796
        %v813 = vrsqrt.pop %v797
        %v814 = vrsqrt.pop %v798
        %v815 = vrsqrt.pop %v799
        %v816 = vrsqrt.pop %v800
        %v817 = vrsqrt.pop %v801
        %v818 = vrsqrt.pop %v802
        %v819 = vrsqrt.pop %v803
        %v820 = vrsqrt.pop %v804
        %v821 = vmul.f32 %v709, %v805
        %v822 = vmul.f32 %v710, %v806
        %v823 = vmul.f32 %v711, %v807
        %v824 = vmul.f32 %v712, %v808
        %v825 = vmul.f32 %v713, %v809
        %v826 = vmul.f32 %v714, %v810
        %v827 = vmul.f32 %v715, %v811
        %v828 = vmul.f32 %v716, %v812
        %v829 = vmul.f32 %v717, %v813
        %v830 = vmul.f32 %v718, %v814
        %v831 = vmul.f32 %v719, %v815
        %v832 = vmul.f32 %v720, %v816
        %v833 = vmul.f32 %v721, %v817
        %v834 = vmul.f32 %v722, %v818
        %v835 = vmul.f32 %v723, %v819
        %v836 = vmul.f32 %v724, %v820
        %vm837 = vcmp.le.f32.partialorder %v789, 0.0
        %vm838 = vcmp.le.f32.partialorder %v790, 0.0
        %vm839 = vcmp.le.f32.partialorder %v791, 0.0
        %vm840 = vcmp.le.f32.partialorder %v792, 0.0
        %vm841 = vcmp.le.f32.partialorder %v793, 0.0
        %vm842 = vcmp.le.f32.partialorder %v794, 0.0
        %vm843 = vcmp.le.f32.partialorder %v795, 0.0
        %vm844 = vcmp.le.f32.partialorder %v796, 0.0
        %vm845 = vcmp.le.f32.partialorder %v797, 0.0
        %vm846 = vcmp.le.f32.partialorder %v798, 0.0
        %vm847 = vcmp.le.f32.partialorder %v799, 0.0
        %vm848 = vcmp.le.f32.partialorder %v800, 0.0
        %vm849 = vcmp.le.f32.partialorder %v801, 0.0
        %vm850 = vcmp.le.f32.partialorder %v802, 0.0
        %vm851 = vcmp.le.f32.partialorder %v803, 0.0
        %vm852 = vcmp.le.f32.partialorder %v804, 0.0
        %v853 = vsel %vm837, 1, 0
        %v854 = vsel %vm838, 1, 0
        %v855 = vsel %vm839, 1, 0
        %v856 = vsel %vm840, 1, 0
        %v857 = vsel %vm841, 1, 0
        %v858 = vsel %vm842, 1, 0
        %v859 = vsel %vm843, 1, 0
        %v860 = vsel %vm844, 1, 0
        %v861 = vsel %vm845, 1, 0
        %v862 = vsel %vm846, 1, 0
        %v863 = vsel %vm847, 1, 0
        %v864 = vsel %vm848, 1, 0
        %v865 = vsel %vm849, 1, 0
        %v866 = vsel %vm850, 1, 0
        %v867 = vsel %vm851, 1, 0
        %v868 = vsel %vm852, 1, 0
        %vm869 = vcmp.eq.s32.totalorder %v853, 1
        %vm870 = vcmp.eq.s32.totalorder %v854, 1
        %vm871 = vcmp.eq.s32.totalorder %v855, 1
        %vm872 = vcmp.eq.s32.totalorder %v856, 1
        %vm873 = vcmp.eq.s32.totalorder %v857, 1
        %vm874 = vcmp.eq.s32.totalorder %v858, 1
        %vm875 = vcmp.eq.s32.totalorder %v859, 1
        %vm876 = vcmp.eq.s32.totalorder %v860, 1
        %vm877 = vcmp.eq.s32.totalorder %v861, 1
        %vm878 = vcmp.eq.s32.totalorder %v862, 1
        %vm879 = vcmp.eq.s32.totalorder %v863, 1
        %vm880 = vcmp.eq.s32.totalorder %v864, 1
        %vm881 = vcmp.eq.s32.totalorder %v865, 1
        %vm882 = vcmp.eq.s32.totalorder %v866, 1
        %vm883 = vcmp.eq.s32.totalorder %v867, 1
        %vm884 = vcmp.eq.s32.totalorder %v868, 1
        %v885 = vsel %vm869, %v550, %v821
        %v886 = vsel %vm870, %v555, %v822
        %v887 = vsel %vm871, %v560, %v823
        %v888 = vsel %vm872, %v565, %v824
        %v889 = vsel %vm873, %v570, %v825
        %v890 = vsel %vm874, %v575, %v826
        %v891 = vsel %vm875, %v580, %v827
        %v892 = vsel %vm876, %v585, %v828
        %v893 = vsel %vm877, %v590, %v829
        %v894 = vsel %vm878, %v595, %v830
        %v895 = vsel %vm879, %v600, %v831
        %v896 = vsel %vm880, %v605, %v832
        %v897 = vsel %vm881, %v610, %v833
        %v898 = vsel %vm882, %v615, %v834
        %v899 = vsel %vm883, %v620, %v835
        %v900 = vsel %vm884, %v625, %v836
        %vm901 = vcmp.ge.f32.partialorder %v885, 0.0
        %vm902 = vcmp.ge.f32.partialorder %v886, 0.0
        %vm903 = vcmp.ge.f32.partialorder %v887, 0.0
        %vm904 = vcmp.ge.f32.partialorder %v888, 0.0
        %vm905 = vcmp.ge.f32.partialorder %v889, 0.0
        %vm906 = vcmp.ge.f32.partialorder %v890, 0.0
        %vm907 = vcmp.ge.f32.partialorder %v891, 0.0
        %vm908 = vcmp.ge.f32.partialorder %v892, 0.0
        %vm909 = vcmp.ge.f32.partialorder %v893, 0.0
        %vm910 = vcmp.ge.f32.partialorder %v894, 0.0
        %vm911 = vcmp.ge.f32.partialorder %v895, 0.0
        %vm912 = vcmp.ge.f32.partialorder %v896, 0.0
        %vm913 = vcmp.ge.f32.partialorder %v897, 0.0
        %vm914 = vcmp.ge.f32.partialorder %v898, 0.0
        %vm915 = vcmp.ge.f32.partialorder %v899, 0.0
        %vm916 = vcmp.ge.f32.partialorder %v900, 0.0
        %vm917 = vmand %vm639, %vm901
        %vm918 = vmand %vm639, %vm902
        %vm919 = vmand %vm639, %vm903
        %vm920 = vmand %vm639, %vm904
        %vm921 = vmand %vm639, %vm905
        %vm922 = vmand %vm639, %vm906
        %vm923 = vmand %vm639, %vm907
        %vm924 = vmand %vm639, %vm908
        %vm925 = vmand %vm639, %vm909
        %vm926 = vmand %vm639, %vm910
        %vm927 = vmand %vm639, %vm911
        %vm928 = vmand %vm639, %vm912
        %vm929 = vmand %vm639, %vm913
        %vm930 = vmand %vm639, %vm914
        %vm931 = vmand %vm639, %vm915
        %vm932 = vmand %vm639, %vm916
        %v933 = vsel %vm917, %v885, -1e+09
        %v934 = vsel %vm918, %v886, -1e+09
        %v935 = vsel %vm919, %v887, -1e+09
        %v936 = vsel %vm920, %v888, -1e+09
        %v937 = vsel %vm921, %v889, -1e+09
        %v938 = vsel %vm922, %v890, -1e+09
        %v939 = vsel %vm923, %v891, -1e+09
        %v940 = vsel %vm924, %v892, -1e+09
        %v941 = vsel %vm925, %v893, -1e+09
        %v942 = vsel %vm926, %v894, -1e+09
        %v943 = vsel %vm927, %v895, -1e+09
        %v944 = vsel %vm928, %v896, -1e+09
        %v945 = vsel %vm929, %v897, -1e+09
        %v946 = vsel %vm930, %v898, -1e+09
        %v947 = vsel %vm931, %v899, -1e+09
        %v948 = vsel %vm932, %v900, -1e+09
        %949 = vmax.xlane.f32.xlu0 %v933
        %v950 = vpop.xlane.xlu0 %949
        %951 = vmax.xlane.f32.xlu0 %v934
        %v952 = vpop.xlane.xlu0 %951
        %953 = vmax.xlane.f32.xlu0 %v935
        %v954 = vpop.xlane.xlu0 %953
        %955 = vmax.xlane.f32.xlu0 %v936
        %v956 = vpop.xlane.xlu0 %955
        %957 = vmax.xlane.f32.xlu0 %v937
        %v958 = vpop.xlane.xlu0 %957
        %959 = vmax.xlane.f32.xlu0 %v938
        %v960 = vpop.xlane.xlu0 %959
        %961 = vmax.xlane.f32.xlu0 %v939
        %v962 = vpop.xlane.xlu0 %961
        %963 = vmax.xlane.f32.xlu0 %v940
        %v964 = vpop.xlane.xlu0 %963
        %965 = vmax.xlane.f32.xlu0 %v941
        %v966 = vpop.xlane.xlu0 %965
        %967 = vmax.xlane.f32.xlu0 %v942
        %v968 = vpop.xlane.xlu0 %967
        %969 = vmax.xlane.f32.xlu0 %v943
        %v970 = vpop.xlane.xlu0 %969
        %971 = vmax.xlane.f32.xlu0 %v944
        %v972 = vpop.xlane.xlu0 %971
        %973 = vmax.xlane.f32.xlu0 %v945
        %v974 = vpop.xlane.xlu0 %973
        %975 = vmax.xlane.f32.xlu0 %v946
        %v976 = vpop.xlane.xlu0 %975
        %977 = vmax.xlane.f32.xlu0 %v947
        %v978 = vpop.xlane.xlu0 %977
        %979 = vmax.xlane.f32.xlu0 %v948
        %v980 = vpop.xlane.xlu0 %979
        %v981 = vsub.f32 %v933, %v950
        %v982 = vsub.f32 %v934, %v952
        %v983 = vsub.f32 %v935, %v954
        %v984 = vsub.f32 %v936, %v956
        %v985 = vsub.f32 %v937, %v958
        %v986 = vsub.f32 %v938, %v960
        %v987 = vsub.f32 %v939, %v962
        %v988 = vsub.f32 %v940, %v964
        %v989 = vsub.f32 %v941, %v966
        %v990 = vsub.f32 %v942, %v968
        %v991 = vsub.f32 %v943, %v970
        %v992 = vsub.f32 %v944, %v972
        %v993 = vsub.f32 %v945, %v974
        %v994 = vsub.f32 %v946, %v976
        %v995 = vsub.f32 %v947, %v978
        %v996 = vsub.f32 %v948, %v980
        %v997 = vmul.f32 %v981, 1.442695
        %v998 = vpow.pop %v997
        %v999 = vmul.f32 %v982, 1.442695
        %v1000 = vpow.pop %v999
        %v1001 = vmul.f32 %v983, 1.442695
        %v1002 = vpow.pop %v1001
        %v1003 = vmul.f32 %v984, 1.442695
        %v1004 = vpow.pop %v1003
        %v1005 = vmul.f32 %v985, 1.442695
        %v1006 = vpow.pop %v1005
        %v1007 = vmul.f32 %v986, 1.442695
        %v1008 = vpow.pop %v1007
        %v1009 = vmul.f32 %v987, 1.442695
        %v1010 = vpow.pop %v1009
        %v1011 = vmul.f32 %v988, 1.442695
        %v1012 = vpow.pop %v1011
        %v1013 = vmul.f32 %v989, 1.442695
        %v1014 = vpow.pop %v1013
        %v1015 = vmul.f32 %v990, 1.442695
        %v1016 = vpow.pop %v1015
        %v1017 = vmul.f32 %v991, 1.442695
        %v1018 = vpow.pop %v1017
        %v1019 = vmul.f32 %v992, 1.442695
        %v1020 = vpow.pop %v1019
        %v1021 = vmul.f32 %v993, 1.442695
        %v1022 = vpow.pop %v1021
        %v1023 = vmul.f32 %v994, 1.442695
        %v1024 = vpow.pop %v1023
        %v1025 = vmul.f32 %v995, 1.442695
        %v1026 = vpow.pop %v1025
        %v1027 = vmul.f32 %v996, 1.442695
        %v1028 = vpow.pop %v1027
        %v1029 = vmul.f32 %v998, %v366
        %v1030 = vmul.f32 %v1000, %v367
        %v1031 = vmul.f32 %v1002, %v368
        %v1032 = vmul.f32 %v1004, %v369
        %v1033 = vmul.f32 %v1006, %v370
        %v1034 = vmul.f32 %v1008, %v371
        %v1035 = vmul.f32 %v1010, %v372
        %v1036 = vmul.f32 %v1012, %v373
        %v1037 = vmul.f32 %v1014, %v374
        %v1038 = vmul.f32 %v1016, %v375
        %v1039 = vmul.f32 %v1018, %v376
        %v1040 = vmul.f32 %v1020, %v377
        %v1041 = vmul.f32 %v1022, %v378
        %v1042 = vmul.f32 %v1024, %v379
        %v1043 = vmul.f32 %v1026, %v380
        %v1044 = vmul.f32 %v1028, %v381
        %v1046 = vlaneseq
        %v1047 = vshrl.u32 %v1046, 7
        %v1048 = vsub.s32 0, %v1047
        %v1049 = vrot.slane %v385, %v1048
        %v1051 = vadd.f32 %v1029, %v1049
        %v1052 = vadd.f32 %v1030, %v1049
        %v1053 = vadd.f32 %v1031, %v1049
        %v1054 = vadd.f32 %v1032, %v1049
        %v1055 = vadd.f32 %v1033, %v1049
        %v1056 = vadd.f32 %v1034, %v1049
        %v1057 = vadd.f32 %v1035, %v1049
        %v1058 = vadd.f32 %v1036, %v1049
        %v1059 = vadd.f32 %v1037, %v1049
        %v1060 = vadd.f32 %v1038, %v1049
        %v1061 = vadd.f32 %v1039, %v1049
        %v1062 = vadd.f32 %v1040, %v1049
        %v1063 = vadd.f32 %v1041, %v1049
        %v1064 = vadd.f32 %v1042, %v1049
        %v1065 = vadd.f32 %v1043, %v1049
        %v1066 = vadd.f32 %v1044, %v1049
        %1067 = vadd.xlane.f32.xlu0 %v1051
        %v1068 = vpop.xlane.xlu0 %1067
        %1069 = vadd.xlane.f32.xlu0 %v1052
        %v1070 = vpop.xlane.xlu0 %1069
        %1071 = vadd.xlane.f32.xlu0 %v1053
        %v1072 = vpop.xlane.xlu0 %1071
        %1073 = vadd.xlane.f32.xlu0 %v1054
        %v1074 = vpop.xlane.xlu0 %1073
        %1075 = vadd.xlane.f32.xlu0 %v1055
        %v1076 = vpop.xlane.xlu0 %1075
        %1077 = vadd.xlane.f32.xlu0 %v1056
        %v1078 = vpop.xlane.xlu0 %1077
        %1079 = vadd.xlane.f32.xlu0 %v1057
        %v1080 = vpop.xlane.xlu0 %1079
        %1081 = vadd.xlane.f32.xlu0 %v1058
        %v1082 = vpop.xlane.xlu0 %1081
        %1083 = vadd.xlane.f32.xlu0 %v1059
        %v1084 = vpop.xlane.xlu0 %1083
        %1085 = vadd.xlane.f32.xlu0 %v1060
        %v1086 = vpop.xlane.xlu0 %1085
        %1087 = vadd.xlane.f32.xlu0 %v1061
        %v1088 = vpop.xlane.xlu0 %1087
        %1089 = vadd.xlane.f32.xlu0 %v1062
        %v1090 = vpop.xlane.xlu0 %1089
        %1091 = vadd.xlane.f32.xlu0 %v1063
        %v1092 = vpop.xlane.xlu0 %1091
        %1093 = vadd.xlane.f32.xlu0 %v1064
        %v1094 = vpop.xlane.xlu0 %1093
        %1095 = vadd.xlane.f32.xlu0 %v1065
        %v1096 = vpop.xlane.xlu0 %1095
        %1097 = vadd.xlane.f32.xlu0 %v1066
        %v1098 = vpop.xlane.xlu0 %1097
        %v1099 = vrcp.pop %v1068
        %v1100 = vmul.f32 1.0, %v1099
        %v1101 = vrcp.pop %v1070
        %v1102 = vmul.f32 1.0, %v1101
        %v1103 = vrcp.pop %v1072
        %v1104 = vmul.f32 1.0, %v1103
        %v1105 = vrcp.pop %v1074
        %v1106 = vmul.f32 1.0, %v1105
        %v1107 = vrcp.pop %v1076
        %v1108 = vmul.f32 1.0, %v1107
        %v1109 = vrcp.pop %v1078
        %v1110 = vmul.f32 1.0, %v1109
        %v1111 = vrcp.pop %v1080
        %v1112 = vmul.f32 1.0, %v1111
        %v1113 = vrcp.pop %v1082
        %v1114 = vmul.f32 1.0, %v1113
        %v1115 = vrcp.pop %v1084
        %v1116 = vmul.f32 1.0, %v1115
        %v1117 = vrcp.pop %v1086
        %v1118 = vmul.f32 1.0, %v1117
        %v1119 = vrcp.pop %v1088
        %v1120 = vmul.f32 1.0, %v1119
        %v1121 = vrcp.pop %v1090
        %v1122 = vmul.f32 1.0, %v1121
        %v1123 = vrcp.pop %v1092
        %v1124 = vmul.f32 1.0, %v1123
        %v1125 = vrcp.pop %v1094
        %v1126 = vmul.f32 1.0, %v1125
        %v1127 = vrcp.pop %v1096
        %v1128 = vmul.f32 1.0, %v1127
        %v1129 = vrcp.pop %v1098
        %v1130 = vmul.f32 1.0, %v1129
        %v1131 = vmul.f32 %v1051, %v1100
        %v1132 = vmul.f32 %v1052, %v1102
        %v1133 = vmul.f32 %v1053, %v1104
        %v1134 = vmul.f32 %v1054, %v1106
        %v1135 = vmul.f32 %v1055, %v1108
        %v1136 = vmul.f32 %v1056, %v1110
        %v1137 = vmul.f32 %v1057, %v1112
        %v1138 = vmul.f32 %v1058, %v1114
        %v1139 = vmul.f32 %v1059, %v1116
        %v1140 = vmul.f32 %v1060, %v1118
        %v1141 = vmul.f32 %v1061, %v1120
        %v1142 = vmul.f32 %v1062, %v1122
        %v1143 = vmul.f32 %v1063, %v1124
        %v1144 = vmul.f32 %v1064, %v1126
        %v1145 = vmul.f32 %v1065, %v1128
        %v1146 = vmul.f32 %v1066, %v1130
        %vm1147 = vcmp.ne.f32.partialorder %v366, 0.0
        %vm1148 = vcmp.ne.f32.partialorder %v367, 0.0
        %vm1149 = vcmp.ne.f32.partialorder %v368, 0.0
        %vm1150 = vcmp.ne.f32.partialorder %v369, 0.0
        %vm1151 = vcmp.ne.f32.partialorder %v370, 0.0
        %vm1152 = vcmp.ne.f32.partialorder %v371, 0.0
        %vm1153 = vcmp.ne.f32.partialorder %v372, 0.0
        %vm1154 = vcmp.ne.f32.partialorder %v373, 0.0
        %vm1155 = vcmp.ne.f32.partialorder %v374, 0.0
        %vm1156 = vcmp.ne.f32.partialorder %v375, 0.0
        %vm1157 = vcmp.ne.f32.partialorder %v376, 0.0
        %vm1158 = vcmp.ne.f32.partialorder %v377, 0.0
        %vm1159 = vcmp.ne.f32.partialorder %v378, 0.0
        %vm1160 = vcmp.ne.f32.partialorder %v379, 0.0
        %vm1161 = vcmp.ne.f32.partialorder %v380, 0.0
        %vm1162 = vcmp.ne.f32.partialorder %v381, 0.0
        %vm1163 = vmand %vm917, %vm1147
        %vm1164 = vmand %vm918, %vm1148
        %vm1165 = vmand %vm919, %vm1149
        %vm1166 = vmand %vm920, %vm1150
        %vm1167 = vmand %vm921, %vm1151
        %vm1168 = vmand %vm922, %vm1152
        %vm1169 = vmand %vm923, %vm1153
        %vm1170 = vmand %vm924, %vm1154
        %vm1171 = vmand %vm925, %vm1155
        %vm1172 = vmand %vm926, %vm1156
        %vm1173 = vmand %vm927, %vm1157
        %vm1174 = vmand %vm928, %vm1158
        %vm1175 = vmand %vm929, %vm1159
        %vm1176 = vmand %vm930, %vm1160
        %vm1177 = vmand %vm931, %vm1161
        %vm1178 = vmand %vm932, %vm1162
        %v1179 = vsel %vm1163, %v1131, 0.0
        %v1180 = vsel %vm1164, %v1132, 0.0
        %v1181 = vsel %vm1165, %v1133, 0.0
        %v1182 = vsel %vm1166, %v1134, 0.0
        %v1183 = vsel %vm1167, %v1135, 0.0
        %v1184 = vsel %vm1168, %v1136, 0.0
        %v1185 = vsel %vm1169, %v1137, 0.0
        %v1186 = vsel %vm1170, %v1138, 0.0
        %v1187 = vsel %vm1171, %v1139, 0.0
        %v1188 = vsel %vm1172, %v1140, 0.0
        %v1189 = vsel %vm1173, %v1141, 0.0
        %v1190 = vsel %vm1174, %v1142, 0.0
        %v1191 = vsel %vm1175, %v1143, 0.0
        %v1192 = vsel %vm1176, %v1144, 0.0
        %v1193 = vsel %vm1177, %v1145, 0.0
        %v1194 = vsel %vm1178, %v1146, 0.0
        %1195 = vst [vmem:[%s296] sm:$0xff] %v1179
        %1196 = vst [vmem:[%s296 + $0x8] sm:$0xff] %v1180
        %1197 = vst [vmem:[%s296 + $0x10] sm:$0xff] %v1181
        %1198 = vst [vmem:[%s296 + $0x18] sm:$0xff] %v1182
        %1199 = vst [vmem:[%s296 + $0x20] sm:$0xff] %v1183
        %1200 = vst [vmem:[%s296 + $0x28] sm:$0xff] %v1184
        %1201 = vst [vmem:[%s296 + $0x30] sm:$0xff] %v1185
        %1202 = vst [vmem:[%s296 + $0x38] sm:$0xff] %v1186
        %1203 = vst [vmem:[%s296 + $0x40] sm:$0xff] %v1187
        %1204 = vst [vmem:[%s296 + $0x48] sm:$0xff] %v1188
        %1205 = vst [vmem:[%s296 + $0x50] sm:$0xff] %v1189
        %1206 = vst [vmem:[%s296 + $0x58] sm:$0xff] %v1190
        %1207 = vst [vmem:[%s296 + $0x60] sm:$0xff] %v1191
        %1208 = vst [vmem:[%s296 + $0x68] sm:$0xff] %v1192
        %1209 = vst [vmem:[%s296 + $0x70] sm:$0xff] %v1193
        %1210 = vst [vmem:[%s296 + $0x78] sm:$0xff] %v1194
        %s1211 = sand.u32 %s161, 1
        %s1212 = scalar_lea.sflag [#allocation3], %s1211
        %s1213 = sand.u32 %s161, 1
        %s1214 = smul.addr %s1213, 128
        %s1215 = scalar_lea.vmem [#allocation2], %s1214
        // Predicated region
        $region37: #{tpu_custom_call.1} parent=35 // pred_check
          %p1216 = pneg %p171
        $region38: #{tpu_custom_call.1} parent=35 // pred_check_branch
          %1218 = sbr.rel (%p1216) target = $region40
        $region39: #{tpu_custom_call.1} parent=35 // pred_region
          %s1219 = smul.u32 16, %s24
          %s1221 = ssub.s32 2048, 2048
          %1222 = vsyncadd %s1212, %s1221
          %s1223 = smul.addr %s25, 16
          %s1224 = sadd.s32 %s1219, %s1223
          %s1225 = smul.addr %s23, 64
          %s1226 = sadd.s32 %s1224, %s1225
          %s1227 = smul.addr %s1226, 128
          %s1228 = scalar_lea.hbm %s4, %s1227
          %s1229 = sshll.u32 %s1215, 4
          %s1230 = int_to_ptr.vmem [resolvable:$true] %s1229
          %1235 = dma.vmem_to_hbm [thread:$0]  %s1230, 2048, %s1228, %s1212, 128, 128, 8
        $region40: #{tpu_custom_call.1} parent=35 // pred_fallthru
          _
      $region36: #{tpu_custom_call.1} parent=5 // pred_fallthru
        _
      %p1236 = scmp.le.s32.totalorder 2, %s13
      // Predicated region
      $region41: #{tpu_custom_call.1} parent=5 // pred_check
        %p1237 = pneg %p1236
      $region42: #{tpu_custom_call.1} parent=5 // pred_check_branch
        %1239 = sbr.rel (%p1237) target = $region44
      $region43: #{tpu_custom_call.1} parent=5 // pred_region
        %s1240 = ssub.s32 %s13, 2
        // Predicated region
        $region45: #{tpu_custom_call.1} parent=43 // pred_check
          %p1241 = pneg %p177
        $region46: #{tpu_custom_call.1} parent=43 // pred_check_branch
          %1243 = sbr.rel (%p1241) target = $region48
        $region47: #{tpu_custom_call.1} parent=43 // pred_region
          %s1244 = sand.u32 %s162, 1
          %s1245 = scalar_lea.sflag [#allocation3], %s1244
          %s1246 = sand.u32 %s162, 1
          %s1247 = smul.addr %s1246, 128
          %s1248 = scalar_lea.vmem [#allocation2], %s1247
          %1249 = dma.done %s1245, 2048
        $region48: #{tpu_custom_call.1} parent=43 // pred_fallthru
          _
      $region44: #{tpu_custom_call.1} parent=5 // pred_fallthru
        _
    $region6: #{tpu_custom_call.1} parent=1 // loop_footer
      %s17 = sadd.s32 1, %s13
    $region7: #{tpu_custom_call.1} parent=1 // loop_footer_branch
      %12 = sbr.rel target = $region3
    $region8: #{tpu_custom_call.1} parent=1 // loop_exit
      _
    %1250 = vsyncpa [#allocation3], 1
    %s1251 = scalar_lea.sflag [#allocation3], 1
    %1252 = vsyncpa %s1251, 1

</llo_original>
